<compile_context>
chip_gen: v7x
topology: tpu7x:2x2x1
jax: 0.10.0
libtpu: 0.0.40
codegen_flags: <defaults>
</compile_context>

<pallas_src>
import functools

import jax
import jax.numpy as jnp
from jax.experimental import pallas as pl
from jax.experimental.pallas import tpu as pltpu


def _bce_kernel(x_ref, y_ref, o_ref, *, steps, tile_rows, m_rows, needs_row_mask):
    s = pl.program_id(0)   # slice (TensorCore split on v7x)
    i = pl.program_id(1)   # reduction step within the slice

    @pl.when(i == 0)
    def _():
        o_ref[...] = jnp.zeros_like(o_ref)

    x = x_ref[...].astype(jnp.float32)
    y = y_ref[...].astype(jnp.float32)   # in-kernel cast keeps targets narrow on the wire

    # Numerically stable BCE with logits (pos_weight=None), same as PyTorch:
    #   loss = max(x, 0) - x*y + log(1 + exp(-|x|))
    loss = jnp.maximum(x, 0.0) - x * y + jnp.log1p(jnp.exp(-jnp.abs(x)))

    w = loss.shape[-1]

    def fold(l):
        # (tile_rows, W) -> (tile_rows//8, 8, W): splits the sublane-major axis at a
        # multiple of 8, so the reshape is layout-free; the axis-0 sum is pure full-vreg
        # VALU accumulation into the resident (8, W) block.
        return l.reshape(tile_rows // 8, 8, w).sum(axis=0)

    if needs_row_mask:
        blk = s * steps + i                      # logical (unclamped) block index
        row0 = blk * tile_rows
        is_edge = row0 + tile_rows > m_rows      # only the partial / overflow blocks

        @pl.when(is_edge)
        def _():
            rows = row0 + jax.lax.broadcasted_iota(jnp.int32, loss.shape, 0)
            o_ref[...] += fold(jnp.where(rows < m_rows, loss, 0.0))

        @pl.when(jnp.logical_not(is_edge))
        def _():
            o_ref[...] += fold(loss)
    else:
        o_ref[...] += fold(loss)


def _default_parallelism():
    """Return (num_slices, use_core_parallel) based on TensorCores per chip."""
    try:
        kind = jax.devices()[0].device_kind.lower()
    except Exception:
        return 1, False
    if "v7" in kind and hasattr(pltpu, "CORE_PARALLEL"):
        return 2, True       # v7x: 2 TensorCores per chip -> explicit core split
    return 1, False          # v5e / v6e: single TensorCore -> no slice axis overhead


def bce_with_logits_mean(inputs, targets, *, num_slices=None, target_block_bytes=2 << 20):
    """inputs: (N, 1, H, W) logits; targets: (N, H, W), any dtype.

    Returns scalar f32 mean BCE-with-logits (reduce=True, class_weight=None).
    """
    n, c, h, w = inputs.shape
    assert c == 1, "module's view() requires channel dim of size 1"
    assert targets.shape == (n, h, w)

    m = n * h
    x2d = inputs.reshape(m, w)
    y2d = targets.reshape(m, w)          # keep original dtype; cast happens in-kernel

    if num_slices is None:
        num_slices, use_core_parallel = _default_parallelism()
    else:
        use_core_parallel = False

    # ---- tiling (no HBM padding) ----------------------------------------------
    w_lanes = ((w + 127) // 128) * 128                    # VMEM footprint per row
    tile_rows = (target_block_bytes // (4 * w_lanes)) // 8 * 8
    tile_rows = max(8, min(tile_rows, 4096))
    if m >= 8:
        tile_rows = min(tile_rows, (m // 8) * 8)          # avoid block taller than array
    tile_rows = max(8, tile_rows)

    nblocks = -(-m // tile_rows)
    num_slices = max(1, min(num_slices, nblocks))
    if num_slices < 2:
        use_core_parallel = False
    steps = -(-nblocks // num_slices)
    needs_clamp = num_slices * steps != nblocks           # overflow blocks exist
    needs_row_mask = (num_slices * steps * tile_rows) != m

    kernel = functools.partial(
        _bce_kernel, steps=steps, tile_rows=tile_rows,
        m_rows=m, needs_row_mask=needs_row_mask)

    def in_map(s, i):
        blk = s * steps + i
        if needs_clamp:
            # Overflow blocks point at the last real block; the in-kernel row mask
            # (logical row0 >= M) zeroes their contribution.
            blk = jnp.minimum(blk, nblocks - 1)
        return (blk, 0)

    if use_core_parallel:
        dim_sem = (pltpu.CORE_PARALLEL, pltpu.ARBITRARY)
    else:
        dim_sem = ("parallel", "arbitrary")

    # VMEM budget: 2 inputs x 2 pipeline buffers x block + accumulators + headroom,
    # capped well under v7x's 32 MiB scoped limit.
    x_blk = tile_rows * w_lanes * x2d.dtype.itemsize
    y_blk = tile_rows * w_lanes * y2d.dtype.itemsize
    vmem_limit = int(min(30 << 20, max(16 << 20, 2 * (x_blk + y_blk) + (4 << 20))))

    partials = pl.pallas_call(
        kernel,
        out_shape=jax.ShapeDtypeStruct((num_slices, 8, w), jnp.float32),
        grid_spec=pltpu.PrefetchScalarGridSpec(
            num_scalar_prefetch=0,
            grid=(num_slices, steps),
            in_specs=[
                pl.BlockSpec((tile_rows, w), in_map),
                pl.BlockSpec((tile_rows, w), in_map),
            ],
            # One lane-dense (8, W) partial-sum block per slice, resident across the
            # reduction axis (accumulator pattern).
            out_specs=pl.BlockSpec((None, 8, w), lambda s, i: (s, 0, 0)),
        ),
        compiler_params=pltpu.CompilerParams(
            dimension_semantics=dim_sem,
            vmem_limit_bytes=vmem_limit,
        ),
    )(x2d, y2d)

    # Final cross-slice / cross-sublane / cross-lane reduce + mean, once in plain JAX.
    return jnp.sum(partials) / jnp.float32(m * w)


def _reference(inputs, targets):
    x = inputs.reshape(inputs.shape[0], inputs.shape[2], inputs.shape[3]).astype(jnp.float32)
    y = targets.astype(jnp.float32)
    loss = jnp.maximum(x, 0.0) - x * y + jnp.log1p(jnp.exp(-jnp.abs(x)))
    return jnp.mean(loss)


if __name__ == "__main__":
    key = jax.random.PRNGKey(0)
    k1, k2, k3, k4 = jax.random.split(key, 4)

    # Primary case (aligned): N=2, C=1, H=16, W=128.
    N, H, W = 2, 16, 128
    inputs = jax.random.normal(k1, (N, 1, H, W), dtype=jnp.float32) * 3.0
    targets = (jax.random.uniform(k2, (N, H, W)) > 0.5).astype(jnp.float32)

    out = jax.block_until_ready(bce_with_logits_mean(inputs, targets))
    ref = _reference(inputs, targets)
    assert jnp.allclose(out, ref, rtol=1e-5, atol=1e-5), (out, ref)

    # Secondary case: unaligned rows/lanes (edge-block mask path, no HBM padding)
    # + narrow (bf16) targets cast in-kernel.
    N2, H2, W2 = 2, 5, 100
    inputs2 = jax.random.normal(k3, (N2, 1, H2, W2), dtype=jnp.float32) * 3.0
    targets2 = (jax.random.uniform(k4, (N2, H2, W2)) > 0.5).astype(jnp.bfloat16)

    out2 = jax.block_until_ready(bce_with_logits_mean(inputs2, targets2))
    ref2 = _reference(inputs2, targets2)
    assert jnp.allclose(out2, ref2, rtol=1e-5, atol=1e-5), (out2, ref2)

    print("KERNEL_OK")
</pallas_src>

<mosaic_0001>
module attributes {stable_mosaic.version = 11 : i64} {
  func.func @_bce_kernel(%arg0: i32, %arg1: i32, %arg2: memref<32x128xf32, #tpu.memory_space<vmem>>, %arg3: memref<32x128xf32, #tpu.memory_space<vmem>>, %arg4: memref<1x8x128xf32, #tpu.memory_space<vmem>>) attributes {dimension_semantics = [#tpu.dimension_semantics<parallel>, #tpu.dimension_semantics<arbitrary>], iteration_bounds = array<i64: 1, 1>, scalar_prefetch = 0 : i64, scratch_operands = 0 : i64, tpu.core_type = #tpu.core_type<tc>, window_params = [{transform_indices = @transform_0, window_bounds = array<i64: 32, 128>}, {transform_indices = @transform_1, window_bounds = array<i64: 32, 128>}, {transform_indices = @transform_2, window_bounds = array<i64: 1, 8, 128>}]} {
    %c0_i32 = arith.constant 0 : i32
    %0 = arith.cmpi eq, %arg1, %c0_i32 : i32
    %1 = arith.extui %0 : i1 to i32
    %c0_i32_0 = arith.constant 0 : i32
    %2 = arith.cmpi ne, %1, %c0_i32_0 : i32
    scf.if %2 {
      %cst_12 = arith.constant 0.000000e+00 : f32
      %23 = vector.broadcast %cst_12 : f32 to vector<8x128xf32>
      %c0_13 = arith.constant 0 : index
      %c0_14 = arith.constant 0 : index
      %c0_15 = arith.constant 0 : index
      %24 = vector.load %arg4[%c0_13, %c0_14, %c0_15] : memref<1x8x128xf32, #tpu.memory_space<vmem>>, vector<1x8x128xf32>
      %25 = vector.shape_cast %24 : vector<1x8x128xf32> to vector<8x128xf32>
      %26 = vector.shape_cast %23 : vector<8x128xf32> to vector<1x8x128xf32>
      tpu.vector_store %arg4[%c0_13, %c0_14, %c0_15], %26 {strides = array<i32>} : memref<1x8x128xf32, #tpu.memory_space<vmem>>, vector<1x8x128xf32>,
    } else {
    }
    %c0 = arith.constant 0 : index
    %c0_1 = arith.constant 0 : index
    %3 = vector.load %arg2[%c0, %c0_1] : memref<32x128xf32, #tpu.memory_space<vmem>>, vector<32x128xf32>
    %c0_2 = arith.constant 0 : index
    %c0_3 = arith.constant 0 : index
    %4 = vector.load %arg3[%c0_2, %c0_3] : memref<32x128xf32, #tpu.memory_space<vmem>>, vector<32x128xf32>
    %cst = arith.constant 0.000000e+00 : f32
    %5 = vector.broadcast %cst : f32 to vector<32x128xf32>
    %6 = arith.maximumf %3, %5 : vector<32x128xf32>
    %7 = arith.mulf %3, %4 : vector<32x128xf32>
    %8 = arith.subf %6, %7 : vector<32x128xf32>
    %9 = math.absf %3 : vector<32x128xf32>
    %cst_4 = arith.constant 0.000000e+00 : f32
    %10 = vector.broadcast %cst_4 : f32 to vector<32x128xf32>
    %11 = arith.subf %10, %9 : vector<32x128xf32>
    %12 = math.exp %11 : vector<32x128xf32>
    %13 = math.log1p %12 : vector<32x128xf32>
    %14 = arith.addf %8, %13 : vector<32x128xf32>
    %c0_5 = arith.constant 0 : index
    %c0_6 = arith.constant 0 : index
    %c0_7 = arith.constant 0 : index
    %15 = vector.load %arg4[%c0_5, %c0_6, %c0_7] : memref<1x8x128xf32, #tpu.memory_space<vmem>>, vector<1x8x128xf32>
    %16 = vector.shape_cast %15 : vector<1x8x128xf32> to vector<8x128xf32>
    %17 = vector.shape_cast %14 : vector<32x128xf32> to vector<4x8x128xf32>
    %cst_8 = arith.constant dense<0.000000e+00> : vector<8x128xf32>
    %18 = vector.multi_reduction <add>, %17, %cst_8 [0] : vector<4x8x128xf32> to vector<8x128xf32>
    %19 = arith.addf %16, %18 : vector<8x128xf32>
    %c0_9 = arith.constant 0 : index
    %c0_10 = arith.constant 0 : index
    %c0_11 = arith.constant 0 : index
    %20 = vector.load %arg4[%c0_9, %c0_10, %c0_11] : memref<1x8x128xf32, #tpu.memory_space<vmem>>, vector<1x8x128xf32>
    %21 = vector.shape_cast %20 : vector<1x8x128xf32> to vector<8x128xf32>
    %22 = vector.shape_cast %19 : vector<8x128xf32> to vector<1x8x128xf32>
    tpu.vector_store %arg4[%c0_9, %c0_10, %c0_11], %22 {strides = array<i32>} : memref<1x8x128xf32, #tpu.memory_space<vmem>>, vector<1x8x128xf32>,
    return
  }
  func.func @transform_0(%arg0: i32, %arg1: i32) -> (i32, i32) {
    %c1_i32 = arith.constant 1 : i32
    %0 = arith.muli %arg0, %c1_i32 : i32
    %1 = arith.addi %0, %arg1 : i32
    %c0_i32 = arith.constant 0 : i32
    %c0_i32_0 = arith.constant 0 : i32
    return %1, %c0_i32 : i32, i32
  }
  func.func @transform_1(%arg0: i32, %arg1: i32) -> (i32, i32) {
    %c1_i32 = arith.constant 1 : i32
    %0 = arith.muli %arg0, %c1_i32 : i32
    %1 = arith.addi %0, %arg1 : i32
    %c0_i32 = arith.constant 0 : i32
    %c0_i32_0 = arith.constant 0 : i32
    return %1, %c0_i32 : i32, i32
  }
  func.func @transform_2(%arg0: i32, %arg1: i32) -> (i32, i32, i32) {
    %c0_i32 = arith.constant 0 : i32
    %c0_i32_0 = arith.constant 0 : i32
    %c0_i32_1 = arith.constant 0 : i32
    return %arg0, %c0_i32, %c0_i32_0 : i32, i32, i32
  }
}

</mosaic_0001>

<llo_original>
// kernel: tpu_custom_call.1
$region0: #{tpu_custom_call.1}
  #allocation0 [shape = 'u32[]', space=smem, size = 0x4, offset = 0x4, fixed_abs, tag = 'smem constant byte address 0x4 - core index']
  #allocation1 [shape = 'u32[144,128]{1,0:T(1,128)}', space=vmem, size = 0x12000, scoped, tag = 'internal scratch']
  %s0 = inlined_call_operand.hbm [shape: f32[32,128], index: 0, kind: input, shape index: {}]
  %s1 = inlined_call_operand.hbm [shape: f32[32,128], index: 1, kind: input, shape index: {}]
  %s2 = inlined_call_operand.hbm [shape: f32[1,8,128], index: 2, kind: output, shape index: {}]
  %s3 = sld [smem:[#allocation0]]
  $region30: #{tpu_custom_call.1} parent=0
    _
  %s5 = ssub.s32 1, %s3
  %s6 = scalar_select 0, %s5, %s3
  $region1: #{tpu_custom_call.1} parent=0
    #allocation2 [shape = 'u8[16384]{0}', space=vmem, size = 0x4000, scoped, tag = 'input window, operand 0, single buffered']
    #allocation3 [shape = 's32[1]{0}', space=sflag, size = 0x4, scoped, tag = 'scoped memory for tpu_custom_call.1']
    #allocation4 [shape = 's32[1]{0}', space=sflag, size = 0x4, scoped, tag = 'scoped memory for tpu_custom_call.1']
    #allocation5 [shape = 'u8[16384]{0}', space=vmem, size = 0x4000, scoped, tag = 'input window, operand 1, single buffered']
    #allocation6 [shape = 's32[1]{0}', space=sflag, size = 0x4, scoped, tag = 'scoped memory for tpu_custom_call.1']
    #allocation7 [shape = 'u8[4096]{0}', space=vmem, size = 0x1000, scoped, tag = 'output window, operand 0, single buffered']
    %7 = vsyncpa [#allocation3], 0
    %8 = vsyncpa [#allocation6], 0
    %9 = vsyncpa [#allocation4], 0
    // Predicated region
    $region2: #{tpu_custom_call.1} parent=1 // pred_check
      _
    $region3: #{tpu_custom_call.1} parent=1 // pred_check_branch
      %11 = sbr.rel (0) target = $region5
    $region4: #{tpu_custom_call.1} parent=1 // pred_region
      %s12 = sadd.s32 0, 0
      %s13 = smul.u32 4, %s12
      %s15 = ssub.s32 512, 512
      %16 = vsyncadd [#allocation3], %s15
      %s17 = smul.addr %s13, 128
      %s18 = scalar_lea.hbm %s0, %s17
      %s19 = sshll.u32 [#allocation2], 4
      %s20 = int_to_ptr.vmem [resolvable:$true] %s19
      %25 = dma.hbm_to_vmem [thread:$0]  %s18, 512, %s20, [#allocation3], 128, 128, 8
    $region5: #{tpu_custom_call.1} parent=1 // pred_fallthru
      _
    // Predicated region
    $region6: #{tpu_custom_call.1} parent=1 // pred_check
      _
    $region7: #{tpu_custom_call.1} parent=1 // pred_check_branch
      %27 = sbr.rel (0) target = $region9
    $region8: #{tpu_custom_call.1} parent=1 // pred_region
      %s28 = sadd.s32 0, 0
      %s29 = smul.u32 4, %s28
      %s31 = ssub.s32 512, 512
      %32 = vsyncadd [#allocation6], %s31
      %s33 = smul.addr %s29, 128
      %s34 = scalar_lea.hbm %s1, %s33
      %s35 = sshll.u32 [#allocation5], 4
      %s36 = int_to_ptr.vmem [resolvable:$true] %s35
      %41 = dma.hbm_to_vmem [thread:$0]  %s34, 512, %s36, [#allocation6], 128, 128, 8
    $region9: #{tpu_custom_call.1} parent=1 // pred_fallthru
      _
    // Predicated region
    $region10: #{tpu_custom_call.1} parent=1 // pred_check
      _
    $region11: #{tpu_custom_call.1} parent=1 // pred_check_branch
      %43 = sbr.rel (0) target = $region13
    $region12: #{tpu_custom_call.1} parent=1 // pred_region
      %44 = dma.done [#allocation3], 512
    $region13: #{tpu_custom_call.1} parent=1 // pred_fallthru
      _
    // Predicated region
    $region14: #{tpu_custom_call.1} parent=1 // pred_check
      _
    $region15: #{tpu_custom_call.1} parent=1 // pred_check_branch
      %46 = sbr.rel (0) target = $region17
    $region16: #{tpu_custom_call.1} parent=1 // pred_region
      %47 = dma.done [#allocation6], 512
    $region17: #{tpu_custom_call.1} parent=1 // pred_fallthru
      _
    %s48 = sadd.s32 0, 0
    %s49 = smul.u32 4, %s48
    %s50 = sadd.s32 0, 0
    %s51 = smul.u32 4, %s50
    %p52 = scmp.eq.s32.totalorder 0, 0
    // Predicated region
    $region18: #{tpu_custom_call.1} parent=1 // pred_check
      %p53 = pneg %p52
    $region19: #{tpu_custom_call.1} parent=1 // pred_check_branch
      %55 = sbr.rel (%p53) target = $region21
    $region20: #{tpu_custom_call.1} parent=1 // pred_region
      %56 = vst [vmem:[#allocation7] sm:$0xff] 0.0
    $region21: #{tpu_custom_call.1} parent=1 // pred_fallthru
      _
    %v57 = vld [vmem:[#allocation2] sm:$0xff]
    %v58 = vld [vmem:[#allocation2 + $0x8] sm:$0xff]
    %v59 = vld [vmem:[#allocation2 + $0x10] sm:$0xff]
    %v60 = vld [vmem:[#allocation2 + $0x18] sm:$0xff]
    %v61 = vld [vmem:[#allocation5] sm:$0xff]
    %v62 = vld [vmem:[#allocation5 + $0x8] sm:$0xff]
    %v63 = vld [vmem:[#allocation5 + $0x10] sm:$0xff]
    %v64 = vld [vmem:[#allocation5 + $0x18] sm:$0xff]
    %v65 = vmax.f32 %v57, 0.0
    %v66 = vmax.f32 %v58, 0.0
    %v67 = vmax.f32 %v59, 0.0
    %v68 = vmax.f32 %v60, 0.0
    %v69 = vmul.f32 %v57, %v61
    %v70 = vmul.f32 %v58, %v62
    %v71 = vmul.f32 %v59, %v63
    %v72 = vmul.f32 %v60, %v64
    %v73 = vsub.f32 %v65, %v69
    %v74 = vsub.f32 %v66, %v70
    %v75 = vsub.f32 %v67, %v71
    %v76 = vsub.f32 %v68, %v72
    %v77 = vand.u32 2147483647, %v57
    %v78 = vand.u32 2147483647, %v58
    %v79 = vand.u32 2147483647, %v59
    %v80 = vand.u32 2147483647, %v60
    %v81 = vsub.f32 0.0, %v77
    %v82 = vsub.f32 0.0, %v78
    %v83 = vsub.f32 0.0, %v79
    %v84 = vsub.f32 0.0, %v80
    %v85 = vmul.f32 %v81, 1.442695
    %v86 = vpow.pop %v85
    %v87 = vmul.f32 %v82, 1.442695
    %v88 = vpow.pop %v87
    %v89 = vmul.f32 %v83, 1.442695
    %v90 = vpow.pop %v89
    %v91 = vmul.f32 %v84, 1.442695
    %v92 = vpow.pop %v91
    %v93 = vadd.f32 %v86, 1.0
    %v94 = vlog2.pop %v93
    %v95 = vmul.f32 %v94, 0.6931472
    %v96 = vmul.f32 -0.5, %v86
    %v97 = vadd.f32 %v96, 1.0
    %v98 = vmul.f32 %v97, %v86
    %v99 = vand.u32 2147483647, %v86
    %vm100 = vcmp.lt.f32.partialorder %v99, 0.0004427343
    %v101 = vsel %vm100, %v98, %v95
    %v102 = vadd.f32 %v88, 1.0
    %v103 = vlog2.pop %v102
    %v104 = vmul.f32 %v103, 0.6931472
    %v105 = vmul.f32 -0.5, %v88
    %v106 = vadd.f32 %v105, 1.0
    %v107 = vmul.f32 %v106, %v88
    %v108 = vand.u32 2147483647, %v88
    %vm109 = vcmp.lt.f32.partialorder %v108, 0.0004427343
    %v110 = vsel %vm109, %v107, %v104
    %v111 = vadd.f32 %v90, 1.0
    %v112 = vlog2.pop %v111
    %v113 = vmul.f32 %v112, 0.6931472
    %v114 = vmul.f32 -0.5, %v90
    %v115 = vadd.f32 %v114, 1.0
    %v116 = vmul.f32 %v115, %v90
    %v117 = vand.u32 2147483647, %v90
    %vm118 = vcmp.lt.f32.partialorder %v117, 0.0004427343
    %v119 = vsel %vm118, %v116, %v113
    %v120 = vadd.f32 %v92, 1.0
    %v121 = vlog2.pop %v120
    %v122 = vmul.f32 %v121, 0.6931472
    %v123 = vmul.f32 -0.5, %v92
    %v124 = vadd.f32 %v123, 1.0
    %v125 = vmul.f32 %v124, %v92
    %v126 = vand.u32 2147483647, %v92
    %vm127 = vcmp.lt.f32.partialorder %v126, 0.0004427343
    %v128 = vsel %vm127, %v125, %v122
    %v129 = vadd.f32 %v73, %v101
    %v130 = vadd.f32 %v74, %v110
    %v131 = vadd.f32 %v75, %v119
    %v132 = vadd.f32 %v76, %v128
    %v133 = vld [vmem:[#allocation7] sm:$0xff]
    %v134 = vadd.f32 %v129, %v130
    %v135 = vadd.f32 %v134, %v131
    %v136 = vadd.f32 %v135, %v132
    %v137 = vadd.f32 %v133, %v136
    %138 = vst [vmem:[#allocation7] sm:$0xff] %v137
    // Predicated region
    $region22: #{tpu_custom_call.1} parent=1 // pred_check
      _
    $region23: #{tpu_custom_call.1} parent=1 // pred_check_branch
      %140 = sbr.rel (0) target = $region25
    $region24: #{tpu_custom_call.1} parent=1 // pred_region
      %s142 = ssub.s32 128, 128
      %143 = vsyncadd [#allocation4], %s142
      %s145 = sshll.u32 [#allocation7], 4
      %s146 = int_to_ptr.vmem [resolvable:$true] %s145
      %148 = dma.vmem_to_hbm [thread:$0]  %s146, 128, %s2, [#allocation4]
    $region25: #{tpu_custom_call.1} parent=1 // pred_fallthru
      _
    // Predicated region
    $region26: #{tpu_custom_call.1} parent=1 // pred_check
      _
    $region27: #{tpu_custom_call.1} parent=1 // pred_check_branch
      %150 = sbr.rel (0) target = $region29
    $region28: #{tpu_custom_call.1} parent=1 // pred_region
      %151 = dma.done [#allocation4], 128
    $region29: #{tpu_custom_call.1} parent=1 // pred_fallthru
      _
    %152 = vsyncpa [#allocation3], 1
    %153 = vsyncpa [#allocation6], 1
    %154 = vsyncpa [#allocation4], 1

</llo_original>
